<compile_context>
chip_gen: v5e
topology: v5e:2x2
jax: 0.10.0
libtpu: 0.0.40
codegen_flags: <defaults>
</compile_context>

<pallas_src>
import jax
import jax.numpy as jnp
from jax.experimental import pallas as pl
from jax.experimental.pallas import tpu as pltpu


def _round_up(n, m):
    return ((n + m - 1) // m) * m


# ---------------------------------------------------------------------------
# Kernel: fused 4-layer MLP on one (tb, S) batch tile.
# ---------------------------------------------------------------------------
def dqn_kernel(x_ref, w1_ref, w2_ref, w3_ref, w4_ref, b_ref, o_ref):
    cdt = w1_ref.dtype                   # bf16 compute dtype
    P = w2_ref.shape[1]                  # padded hidden lane width
    Q = w4_ref.shape[1]                  # padded output lane width
    b = b_ref[...]                       # (4, max(P, Q)) f32, VMEM-resident

    # Layer 1: x arrives f32; f32->bf16 cast done here (VPU, hidden under MXU).
    h = jnp.dot(x_ref[...].astype(cdt), w1_ref[...],
                preferred_element_type=jnp.float32)
    h = jnp.maximum(h + b[0:1, :P], 0.0)

    # Layer 2
    h = jnp.dot(h.astype(cdt), w2_ref[...], preferred_element_type=jnp.float32)
    h = jnp.maximum(h + b[1:2, :P], 0.0)

    # Layer 3
    h = jnp.dot(h.astype(cdt), w3_ref[...], preferred_element_type=jnp.float32)
    h = jnp.maximum(h + b[2:3, :P], 0.0)

    # Layer 4 (no activation): lane-dense bf16 store.
    out = jnp.dot(h.astype(cdt), w4_ref[...], preferred_element_type=jnp.float32)
    o_ref[...] = (out + b[3:4, :Q]).astype(o_ref.dtype)


# ---------------------------------------------------------------------------
# Wrapper-side operand preparation: pad widths to multiples of 128, cast
# weights to bf16, stack biases into one (4, BW) f32 array.
# ---------------------------------------------------------------------------
def _prepare_operands(params, compute_dtype=jnp.bfloat16):
    (w1, b1), (w2, b2), (w3, b3), (w4, b4) = params
    S, L = w1.shape
    A = w4.shape[1]
    P = _round_up(max(L, 128), 128)               # hidden lane width
    Q = _round_up(max(A, 128), 128)               # output lane width (kept
                                                  # independent of P so small
                                                  # action_n => small writeback)
    Sp = S if S <= 128 else _round_up(S, 128)     # pad big/unaligned state dims
    BW = max(P, Q)

    w1p = jnp.pad(w1, ((0, Sp - S), (0, P - L))).astype(compute_dtype)
    w2p = jnp.pad(w2, ((0, P - L), (0, P - L))).astype(compute_dtype)
    w3p = jnp.pad(w3, ((0, P - L), (0, P - L))).astype(compute_dtype)
    w4p = jnp.pad(w4, ((0, P - L), (0, Q - A))).astype(compute_dtype)

    bs = jnp.stack([
        jnp.pad(b1.reshape(-1), (0, BW - L)),
        jnp.pad(b2.reshape(-1), (0, BW - L)),
        jnp.pad(b3.reshape(-1), (0, BW - L)),
        jnp.pad(b4.reshape(-1), (0, BW - A)),
    ]).astype(jnp.float32)                        # (4, BW), bias adds stay f32

    return (w1p, w2p, w3p, w4p, bs), P, Q, Sp


# ---------------------------------------------------------------------------
# VMEM budgeting & batch-tile selection.
# ---------------------------------------------------------------------------
_VMEM_BUDGET = 40 * 2 ** 20      # conservative vs v7x's 64 MiB physical VMEM


def _vmem_estimate(tb, S, P, Q, out_itemsize):
    weights = 2 * (S * P + 2 * P * P + P * Q)     # bf16, single-buffered residents
    bias = 4 * max(P, Q) * 4
    x_buf = 2 * tb * S * 4                        # double-buffered f32 input tiles
    o_buf = 2 * tb * Q * out_itemsize             # double-buffered output tiles
    live = 3 * tb * P * 4                         # f32 intermediates headroom
    return weights + bias + x_buf + o_buf + live


def _pick_batch_tile(B, max_tb):
    """Batch tile: multiple of 16 (bf16 sublane packing), bounded padding
    waste, and >=2 grid steps when possible (v7x megacore sharding)."""
    max_tb = max(16, min(max_tb, 1024))
    for tb in (1024, 512, 256, 128, 64, 32, 16):  # largest acceptable first
        if tb > max_tb:
            continue
        Bp = _round_up(B, tb)
        low_waste = (Bp - B) <= Bp // 8
        enough_tiles = (Bp // tb >= 2) or (B < 32)
        if low_waste and enough_tiles:
            return tb, Bp
    tb = min(_round_up(B, 16), max_tb)            # tiny / awkward batch sizes
    return tb, _round_up(B, tb)


# ---------------------------------------------------------------------------
# Forward wrapper.
# ---------------------------------------------------------------------------
def dqn_forward(x, params, *, block_b=1024, compute_dtype=jnp.bfloat16,
                out_dtype=jnp.bfloat16, return_padded=False):
    """x: (B, state_size) f32.  params: [(W, b)] x 4, W (in,out), b (1,out)."""
    B, S = x.shape
    A = params[3][0].shape[1]

    (w1p, w2p, w3p, w4p, bs), P, Q, Sp = _prepare_operands(params, compute_dtype)
    if Sp != S:
        x = jnp.pad(x, ((0, 0), (0, Sp - S)))
    # NOTE: x stays f32 here; the f32->bf16 cast happens inside the kernel so
    # x crosses HBM exactly once (no wrapper-side cast pass).

    out_itemsize = jnp.dtype(out_dtype).itemsize
    max_tb = block_b
    if P >= 512:                                   # wide hidden layers: cap tile
        max_tb = min(max_tb, 512)                  # (v7x 64 MiB / v5e 16 MiB scoped)
    while max_tb > 16 and _vmem_estimate(max_tb, Sp, P, Q, out_itemsize) > _VMEM_BUDGET:
        max_tb //= 2
    tb, Bp = _pick_batch_tile(B, max_tb)

    xp = x if Bp == B else jnp.pad(x, ((0, Bp - B), (0, 0)))

    vmem_limit = int(min(max(2 * _vmem_estimate(tb, Sp, P, Q, out_itemsize),
                             32 * 2 ** 20), 48 * 2 ** 20))

    def run(single_buffer_weights):
        res_kw = ({"pipeline_mode": pl.Buffered(1)}
                  if single_buffer_weights else {})
        in_specs = [
            pl.BlockSpec((tb, Sp), lambda i: (i, 0)),                # x: streamed
            pl.BlockSpec((Sp, P), lambda i: (0, 0), **res_kw),       # w1: resident
            pl.BlockSpec((P, P), lambda i: (0, 0), **res_kw),        # w2: resident
            pl.BlockSpec((P, P), lambda i: (0, 0), **res_kw),        # w3: resident
            pl.BlockSpec((P, Q), lambda i: (0, 0), **res_kw),        # w4: resident
            pl.BlockSpec((4, bs.shape[1]), lambda i: (0, 0), **res_kw),  # biases
        ]
        return pl.pallas_call(
            dqn_kernel,
            out_shape=jax.ShapeDtypeStruct((Bp, Q), out_dtype),
            grid=(Bp // tb,),
            in_specs=in_specs,
            out_specs=pl.BlockSpec((tb, Q), lambda i: (i, 0)),       # lane-dense
            compiler_params=pltpu.CompilerParams(
                dimension_semantics=("parallel",),
                vmem_limit_bytes=vmem_limit),
        )(xp, w1p, w2p, w3p, w4p, bs)

    try:
        out = run(True)      # single-buffer the grid-invariant weight operands
    except Exception:        # pipeline_mode=pl.Buffered not supported: fall back
        out = run(False)

    if return_padded:
        # Padded action columns are exact zeros; if the consumer argmaxes over
        # the padded block, re-pad b4 with a large negative value instead.
        return out, (B, A)
    # This slice is a separate XLA copy; prefer return_padded=True and fusing
    # the slice into the consumer when this forward runs inside a larger jit.
    return out[:B, :A]


# ---------------------------------------------------------------------------
# Parameter init (mimics torch.nn.Linear defaults) and references.
# ---------------------------------------------------------------------------
def init_linear(key, fan_in, fan_out):
    kw, kb = jax.random.split(key)
    bound = 1.0 / jnp.sqrt(jnp.float32(fan_in))
    w = jax.random.uniform(kw, (fan_in, fan_out), jnp.float32, -bound, bound)
    b = jax.random.uniform(kb, (1, fan_out), jnp.float32, -bound, bound)
    return w, b


def make_dqn_params(key, layer_size, state_size, action_n):
    k1, k2, k3, k4 = jax.random.split(key, 4)
    return [
        init_linear(k1, state_size, layer_size),
        init_linear(k2, layer_size, layer_size),
        init_linear(k3, layer_size, layer_size),
        init_linear(k4, layer_size, action_n),
    ]


def dqn_reference_f32(x, params):
    """Pure-f32 reference matching the PyTorch module."""
    h = x
    for i, (w, b) in enumerate(params):
        h = h @ w + b
        if i < len(params) - 1:
            h = jnp.maximum(h, 0.0)
    return h


def dqn_reference_like_kernel(x, params, compute_dtype=jnp.bfloat16,
                              out_dtype=jnp.bfloat16):
    """Plain-JAX reference doing exactly the kernel's padded/bf16 math."""
    (w1p, w2p, w3p, w4p, bs), P, Q, Sp = _prepare_operands(params, compute_dtype)
    A = params[3][0].shape[1]
    S = x.shape[1]
    if Sp != S:
        x = jnp.pad(x, ((0, 0), (0, Sp - S)))
    h = x
    widths = (P, P, P, Q)
    for i, w in enumerate((w1p, w2p, w3p, w4p)):
        h = (jnp.dot(h.astype(compute_dtype), w,
                     preferred_element_type=jnp.float32)
             + bs[i:i + 1, :widths[i]])
        if i < 3:
            h = jnp.maximum(h, 0.0)
    return h.astype(out_dtype)[:, :A]


if __name__ == "__main__":
    # Small, module-consistent shapes.
    batch, state_size, layer_size, action_n = 8, 16, 32, 8

    key = jax.random.PRNGKey(0)
    kx, kp = jax.random.split(key)
    x = jax.random.normal(kx, (batch, state_size), jnp.float32)
    params = make_dqn_params(kp, layer_size, state_size, action_n)

    out = jax.block_until_ready(dqn_forward(x, params))
    assert out.shape == (batch, action_n)

    # Exact-math reference (same padding / bf16 casts) -> tight tolerance.
    ref_matched = dqn_reference_like_kernel(x, params)
    assert jnp.allclose(out.astype(jnp.float32), ref_matched.astype(jnp.float32),
                        atol=1e-2, rtol=1e-2), \
        "Pallas kernel mismatch vs matched-precision reference"

    # Pure-f32 reference of the original module -> loose tolerance (bf16 path).
    ref_f32 = dqn_reference_f32(x, params)
    assert jnp.allclose(out.astype(jnp.float32), ref_f32, atol=5e-2, rtol=5e-2), \
        "Pallas kernel mismatch vs f32 reference"

    print("KERNEL_OK")
</pallas_src>

<mosaic_0001>
module attributes {stable_mosaic.version = 11 : i64} {
  func.func @dqn_kernel(%arg0: i32, %arg1: memref<16x16xf32, #tpu.memory_space<vmem>>, %arg2: memref<16x128xbf16, #tpu.memory_space<vmem>>, %arg3: memref<128x128xbf16, #tpu.memory_space<vmem>>, %arg4: memref<128x128xbf16, #tpu.memory_space<vmem>>, %arg5: memref<128x128xbf16, #tpu.memory_space<vmem>>, %arg6: memref<4x128xf32, #tpu.memory_space<vmem>>, %arg7: memref<16x128xbf16, #tpu.memory_space<vmem>>) attributes {dimension_semantics = [#tpu.dimension_semantics<parallel>], iteration_bounds = array<i64: 1>, scalar_prefetch = 0 : i64, scratch_operands = 0 : i64, tpu.core_type = #tpu.core_type<tc>, window_params = [{transform_indices = @transform_0, window_bounds = array<i64: 16, 16>}, {pipeline_mode = #tpu.pipeline_mode<synchronous>, transform_indices = @transform_1, window_bounds = array<i64: 16, 128>}, {pipeline_mode = #tpu.pipeline_mode<synchronous>, transform_indices = @transform_2, window_bounds = array<i64: 128, 128>}, {pipeline_mode = #tpu.pipeline_mode<synchronous>, transform_indices = @transform_3, window_bounds = array<i64: 128, 128>}, {pipeline_mode = #tpu.pipeline_mode<synchronous>, transform_indices = @transform_4, window_bounds = array<i64: 128, 128>}, {pipeline_mode = #tpu.pipeline_mode<synchronous>, transform_indices = @transform_5, window_bounds = array<i64: 4, 128>}, {transform_indices = @transform_6, window_bounds = array<i64: 16, 128>}]} {
    %c0 = arith.constant 0 : index
    %c0_0 = arith.constant 0 : index
    %0 = vector.load %arg6[%c0, %c0_0] : memref<4x128xf32, #tpu.memory_space<vmem>>, vector<4x128xf32>
    %c0_1 = arith.constant 0 : index
    %c0_2 = arith.constant 0 : index
    %1 = vector.load %arg1[%c0_1, %c0_2] : memref<16x16xf32, #tpu.memory_space<vmem>>, vector<16x16xf32>
    %2 = arith.truncf %1 : vector<16x16xf32> to vector<16x16xbf16>
    %c0_3 = arith.constant 0 : index
    %c0_4 = arith.constant 0 : index
    %3 = vector.load %arg2[%c0_3, %c0_4] : memref<16x128xbf16, #tpu.memory_space<vmem>>, vector<16x128xbf16>
    %cst = arith.constant dense<0.000000e+00> : vector<16x128xf32>
    %4 = tpu.matmul %2, %3, %cst {dimension_numbers = #tpu.dot_dimension_numbers<[1], [0], [0], [1], [0, 0, 1, 1], [], []>} : vector<16x16xbf16>, vector<16x128xbf16>, vector<16x128xf32> -> vector<16x128xf32>
    %5 = vector.extract_strided_slice %0 {offsets = [0, 0], sizes = [1, 128], strides = [1, 1]} : vector<4x128xf32> to vector<1x128xf32>
    %6 = vector.broadcast %5 : vector<1x128xf32> to vector<16x128xf32>
    %7 = arith.addf %4, %6 : vector<16x128xf32>
    %cst_5 = arith.constant 0.000000e+00 : f32
    %8 = vector.broadcast %cst_5 : f32 to vector<16x128xf32>
    %9 = arith.maximumf %7, %8 : vector<16x128xf32>
    %10 = arith.truncf %9 : vector<16x128xf32> to vector<16x128xbf16>
    %c0_6 = arith.constant 0 : index
    %c0_7 = arith.constant 0 : index
    %11 = vector.load %arg3[%c0_6, %c0_7] : memref<128x128xbf16, #tpu.memory_space<vmem>>, vector<128x128xbf16>
    %cst_8 = arith.constant dense<0.000000e+00> : vector<16x128xf32>
    %12 = tpu.matmul %10, %11, %cst_8 {dimension_numbers = #tpu.dot_dimension_numbers<[1], [0], [0], [1], [0, 0, 1, 1], [], []>} : vector<16x128xbf16>, vector<128x128xbf16>, vector<16x128xf32> -> vector<16x128xf32>
    %13 = vector.extract_strided_slice %0 {offsets = [1, 0], sizes = [1, 128], strides = [1, 1]} : vector<4x128xf32> to vector<1x128xf32>
    %14 = vector.broadcast %13 : vector<1x128xf32> to vector<16x128xf32>
    %15 = arith.addf %12, %14 : vector<16x128xf32>
    %cst_9 = arith.constant 0.000000e+00 : f32
    %16 = vector.broadcast %cst_9 : f32 to vector<16x128xf32>
    %17 = arith.maximumf %15, %16 : vector<16x128xf32>
    %18 = arith.truncf %17 : vector<16x128xf32> to vector<16x128xbf16>
    %c0_10 = arith.constant 0 : index
    %c0_11 = arith.constant 0 : index
    %19 = vector.load %arg4[%c0_10, %c0_11] : memref<128x128xbf16, #tpu.memory_space<vmem>>, vector<128x128xbf16>
    %cst_12 = arith.constant dense<0.000000e+00> : vector<16x128xf32>
    %20 = tpu.matmul %18, %19, %cst_12 {dimension_numbers = #tpu.dot_dimension_numbers<[1], [0], [0], [1], [0, 0, 1, 1], [], []>} : vector<16x128xbf16>, vector<128x128xbf16>, vector<16x128xf32> -> vector<16x128xf32>
    %21 = vector.extract_strided_slice %0 {offsets = [2, 0], sizes = [1, 128], strides = [1, 1]} : vector<4x128xf32> to vector<1x128xf32>
    %22 = vector.broadcast %21 : vector<1x128xf32> to vector<16x128xf32>
    %23 = arith.addf %20, %22 : vector<16x128xf32>
    %cst_13 = arith.constant 0.000000e+00 : f32
    %24 = vector.broadcast %cst_13 : f32 to vector<16x128xf32>
    %25 = arith.maximumf %23, %24 : vector<16x128xf32>
    %26 = arith.truncf %25 : vector<16x128xf32> to vector<16x128xbf16>
    %c0_14 = arith.constant 0 : index
    %c0_15 = arith.constant 0 : index
    %27 = vector.load %arg5[%c0_14, %c0_15] : memref<128x128xbf16, #tpu.memory_space<vmem>>, vector<128x128xbf16>
    %cst_16 = arith.constant dense<0.000000e+00> : vector<16x128xf32>
    %28 = tpu.matmul %26, %27, %cst_16 {dimension_numbers = #tpu.dot_dimension_numbers<[1], [0], [0], [1], [0, 0, 1, 1], [], []>} : vector<16x128xbf16>, vector<128x128xbf16>, vector<16x128xf32> -> vector<16x128xf32>
    %29 = vector.extract_strided_slice %0 {offsets = [3, 0], sizes = [1, 128], strides = [1, 1]} : vector<4x128xf32> to vector<1x128xf32>
    %30 = vector.broadcast %29 : vector<1x128xf32> to vector<16x128xf32>
    %31 = arith.addf %28, %30 : vector<16x128xf32>
    %32 = arith.truncf %31 : vector<16x128xf32> to vector<16x128xbf16>
    %c0_17 = arith.constant 0 : index
    %c0_18 = arith.constant 0 : index
    %33 = vector.load %arg7[%c0_17, %c0_18] : memref<16x128xbf16, #tpu.memory_space<vmem>>, vector<16x128xbf16>
    tpu.vector_store %arg7[%c0_17, %c0_18], %32 {strides = array<i32>} : memref<16x128xbf16, #tpu.memory_space<vmem>>, vector<16x128xbf16>,
    return
  }
  func.func @transform_0(%arg0: i32) -> (i32, i32) {
    %c0_i32 = arith.constant 0 : i32
    %c0_i32_0 = arith.constant 0 : i32
    return %arg0, %c0_i32 : i32, i32
  }
  func.func @transform_1(%arg0: i32) -> (i32, i32) {
    %c0_i32 = arith.constant 0 : i32
    %c0_i32_0 = arith.constant 0 : i32
    %c0_i32_1 = arith.constant 0 : i32
    return %c0_i32, %c0_i32_0 : i32, i32
  }
  func.func @transform_2(%arg0: i32) -> (i32, i32) {
    %c0_i32 = arith.constant 0 : i32
    %c0_i32_0 = arith.constant 0 : i32
    %c0_i32_1 = arith.constant 0 : i32
    return %c0_i32, %c0_i32_0 : i32, i32
  }
  func.func @transform_3(%arg0: i32) -> (i32, i32) {
    %c0_i32 = arith.constant 0 : i32
    %c0_i32_0 = arith.constant 0 : i32
    %c0_i32_1 = arith.constant 0 : i32
    return %c0_i32, %c0_i32_0 : i32, i32
  }
  func.func @transform_4(%arg0: i32) -> (i32, i32) {
    %c0_i32 = arith.constant 0 : i32
    %c0_i32_0 = arith.constant 0 : i32
    %c0_i32_1 = arith.constant 0 : i32
    return %c0_i32, %c0_i32_0 : i32, i32
  }
  func.func @transform_5(%arg0: i32) -> (i32, i32) {
    %c0_i32 = arith.constant 0 : i32
    %c0_i32_0 = arith.constant 0 : i32
    %c0_i32_1 = arith.constant 0 : i32
    return %c0_i32, %c0_i32_0 : i32, i32
  }
  func.func @transform_6(%arg0: i32) -> (i32, i32) {
    %c0_i32 = arith.constant 0 : i32
    %c0_i32_0 = arith.constant 0 : i32
    return %arg0, %c0_i32 : i32, i32
  }
}

module attributes {stable_mosaic.version = 11 : i64} {
  func.func @dqn_kernel(%arg0: i32, %arg1: memref<16x16xf32, #tpu.memory_space<vmem>>, %arg2: memref<16x128xbf16, #tpu.memory_space<vmem>>, %arg3: memref<128x128xbf16, #tpu.memory_space<vmem>>, %arg4: memref<128x128xbf16, #tpu.memory_space<vmem>>, %arg5: memref<128x128xbf16, #tpu.memory_space<vmem>>, %arg6: memref<4x128xf32, #tpu.memory_space<vmem>>, %arg7: memref<16x128xbf16, #tpu.memory_space<vmem>>) attributes {dimension_semantics = [#tpu.dimension_semantics<parallel>], iteration_bounds = array<i64: 1>, scalar_prefetch = 0 : i64, scratch_operands = 0 : i64, tpu.core_type = #tpu.core_type<tc>, window_params = [{transform_indices = @transform_0, window_bounds = array<i64: 16, 16>}, {pipeline_mode = #tpu.pipeline_mode<synchronous>, transform_indices = @transform_1, window_bounds = array<i64: 16, 128>}, {pipeline_mode = #tpu.pipeline_mode<synchronous>, transform_indices = @transform_2, window_bounds = array<i64: 128, 128>}, {pipeline_mode = #tpu.pipeline_mode<synchronous>, transform_indices = @transform_3, window_bounds = array<i64: 128, 128>}, {pipeline_mode = #tpu.pipeline_mode<synchronous>, transform_indices = @transform_4, window_bounds = array<i64: 128, 128>}, {pipeline_mode = #tpu.pipeline_mode<synchronous>, transform_indices = @transform_5, window_bounds = array<i64: 4, 128>}, {transform_indices = @transform_6, window_bounds = array<i64: 16, 128>}]} {
    %c0 = arith.constant 0 : index
    %c0_0 = arith.constant 0 : index
    %0 = vector.load %arg6[%c0, %c0_0] : memref<4x128xf32, #tpu.memory_space<vmem>>, vector<4x128xf32>
    %c0_1 = arith.constant 0 : index
    %c0_2 = arith.constant 0 : index
    %1 = vector.load %arg1[%c0_1, %c0_2] : memref<16x16xf32, #tpu.memory_space<vmem>>, vector<16x16xf32>
    %2 = arith.truncf %1 : vector<16x16xf32> to vector<16x16xbf16>
    %c0_3 = arith.constant 0 : index
    %c0_4 = arith.constant 0 : index
    %3 = vector.load %arg2[%c0_3, %c0_4] : memref<16x128xbf16, #tpu.memory_space<vmem>>, vector<16x128xbf16>
    %cst = arith.constant dense<0.000000e+00> : vector<16x128xf32>
    %4 = tpu.matmul %2, %3, %cst {dimension_numbers = #tpu.dot_dimension_numbers<[1], [0], [0], [1], [0, 0, 1, 1], [], []>} : vector<16x16xbf16>, vector<16x128xbf16>, vector<16x128xf32> -> vector<16x128xf32>
    %5 = vector.extract_strided_slice %0 {offsets = [0, 0], sizes = [1, 128], strides = [1, 1]} : vector<4x128xf32> to vector<1x128xf32>
    %6 = vector.broadcast %5 : vector<1x128xf32> to vector<16x128xf32>
    %7 = arith.addf %4, %6 : vector<16x128xf32>
    %cst_5 = arith.constant 0.000000e+00 : f32
    %8 = vector.broadcast %cst_5 : f32 to vector<16x128xf32>
    %9 = arith.maximumf %7, %8 : vector<16x128xf32>
    %10 = arith.truncf %9 : vector<16x128xf32> to vector<16x128xbf16>
    %c0_6 = arith.constant 0 : index
    %c0_7 = arith.constant 0 : index
    %11 = vector.load %arg3[%c0_6, %c0_7] : memref<128x128xbf16, #tpu.memory_space<vmem>>, vector<128x128xbf16>
    %cst_8 = arith.constant dense<0.000000e+00> : vector<16x128xf32>
    %12 = tpu.matmul %10, %11, %cst_8 {dimension_numbers = #tpu.dot_dimension_numbers<[1], [0], [0], [1], [0, 0, 1, 1], [], []>} : vector<16x128xbf16>, vector<128x128xbf16>, vector<16x128xf32> -> vector<16x128xf32>
    %13 = vector.extract_strided_slice %0 {offsets = [1, 0], sizes = [1, 128], strides = [1, 1]} : vector<4x128xf32> to vector<1x128xf32>
    %14 = vector.broadcast %13 : vector<1x128xf32> to vector<16x128xf32>
    %15 = arith.addf %12, %14 : vector<16x128xf32>
    %cst_9 = arith.constant 0.000000e+00 : f32
    %16 = vector.broadcast %cst_9 : f32 to vector<16x128xf32>
    %17 = arith.maximumf %15, %16 : vector<16x128xf32>
    %18 = arith.truncf %17 : vector<16x128xf32> to vector<16x128xbf16>
    %c0_10 = arith.constant 0 : index
    %c0_11 = arith.constant 0 : index
    %19 = vector.load %arg4[%c0_10, %c0_11] : memref<128x128xbf16, #tpu.memory_space<vmem>>, vector<128x128xbf16>
    %cst_12 = arith.constant dense<0.000000e+00> : vector<16x128xf32>
    %20 = tpu.matmul %18, %19, %cst_12 {dimension_numbers = #tpu.dot_dimension_numbers<[1], [0], [0], [1], [0, 0, 1, 1], [], []>} : vector<16x128xbf16>, vector<128x128xbf16>, vector<16x128xf32> -> vector<16x128xf32>
    %21 = vector.extract_strided_slice %0 {offsets = [2, 0], sizes = [1, 128], strides = [1, 1]} : vector<4x128xf32> to vector<1x128xf32>
    %22 = vector.broadcast %21 : vector<1x128xf32> to vector<16x128xf32>
    %23 = arith.addf %20, %22 : vector<16x128xf32>
    %cst_13 = arith.constant 0.000000e+00 : f32
    %24 = vector.broadcast %cst_13 : f32 to vector<16x128xf32>
    %25 = arith.maximumf %23, %24 : vector<16x128xf32>
    %26 = arith.truncf %25 : vector<16x128xf32> to vector<16x128xbf16>
    %c0_14 = arith.constant 0 : index
    %c0_15 = arith.constant 0 : index
    %27 = vector.load %arg5[%c0_14, %c0_15] : memref<128x128xbf16, #tpu.memory_space<vmem>>, vector<128x128xbf16>
    %cst_16 = arith.constant dense<0.000000e+00> : vector<16x128xf32>
    %28 = tpu.matmul %26, %27, %cst_16 {dimension_numbers = #tpu.dot_dimension_numbers<[1], [0], [0], [1], [0, 0, 1, 1], [], []>} : vector<16x128xbf16>, vector<128x128xbf16>, vector<16x128xf32> -> vector<16x128xf32>
    %29 = vector.extract_strided_slice %0 {offsets = [3, 0], sizes = [1, 128], strides = [1, 1]} : vector<4x128xf32> to vector<1x128xf32>
    %30 = vector.broadcast %29 : vector<1x128xf32> to vector<16x128xf32>
    %31 = arith.addf %28, %30 : vector<16x128xf32>
    %32 = arith.truncf %31 : vector<16x128xf32> to vector<16x128xbf16>
    %c0_17 = arith.constant 0 : index
    %c0_18 = arith.constant 0 : index
    %33 = vector.load %arg7[%c0_17, %c0_18] : memref<16x128xbf16, #tpu.memory_space<vmem>>, vector<16x128xbf16>
    tpu.vector_store %arg7[%c0_17, %c0_18], %32 {strides = array<i32>} : memref<16x128xbf16, #tpu.memory_space<vmem>>, vector<16x128xbf16>,
    return
  }
  func.func @transform_0(%arg0: i32) -> (i32, i32) {
    %c0_i32 = arith.constant 0 : i32
    %c0_i32_0 = arith.constant 0 : i32
    return %arg0, %c0_i32 : i32, i32
  }
  func.func @transform_1(%arg0: i32) -> (i32, i32) {
    %c0_i32 = arith.constant 0 : i32
    %c0_i32_0 = arith.constant 0 : i32
    %c0_i32_1 = arith.constant 0 : i32
    return %c0_i32, %c0_i32_0 : i32, i32
  }
  func.func @transform_2(%arg0: i32) -> (i32, i32) {
    %c0_i32 = arith.constant 0 : i32
    %c0_i32_0 = arith.constant 0 : i32
    %c0_i32_1 = arith.constant 0 : i32
    return %c0_i32, %c0_i32_0 : i32, i32
  }
  func.func @transform_3(%arg0: i32) -> (i32, i32) {
    %c0_i32 = arith.constant 0 : i32
    %c0_i32_0 = arith.constant 0 : i32
    %c0_i32_1 = arith.constant 0 : i32
    return %c0_i32, %c0_i32_0 : i32, i32
  }
  func.func @transform_4(%arg0: i32) -> (i32, i32) {
    %c0_i32 = arith.constant 0 : i32
    %c0_i32_0 = arith.constant 0 : i32
    %c0_i32_1 = arith.constant 0 : i32
    return %c0_i32, %c0_i32_0 : i32, i32
  }
  func.func @transform_5(%arg0: i32) -> (i32, i32) {
    %c0_i32 = arith.constant 0 : i32
    %c0_i32_0 = arith.constant 0 : i32
    %c0_i32_1 = arith.constant 0 : i32
    return %c0_i32, %c0_i32_0 : i32, i32
  }
  func.func @transform_6(%arg0: i32) -> (i32, i32) {
    %c0_i32 = arith.constant 0 : i32
    %c0_i32_0 = arith.constant 0 : i32
    return %arg0, %c0_i32 : i32, i32
  }
}

</mosaic_0001>

<llo_original>
// kernel: tpu_custom_call.1
$region0: #{tpu_custom_call.1}
  #allocation0 [shape = 'u32[]', space=smem, size = 0x4, offset = 0x4, fixed_abs, tag = 'smem constant byte address 0x4 - core index']
  #allocation1 [shape = 'u32[72,128]{1,0:T(1,128)}', space=vmem, size = 0x9000, scoped, tag = 'internal scratch']
  %s0 = inlined_call_operand.hbm [shape: f32[16,16], index: 0, kind: input, shape index: {}]
  %s1 = inlined_call_operand.hbm [shape: bf16[16,128], index: 1, kind: input, shape index: {}]
  %s2 = inlined_call_operand.hbm [shape: bf16[128,128], index: 2, kind: input, shape index: {}]
  %s3 = inlined_call_operand.hbm [shape: bf16[128,128], index: 3, kind: input, shape index: {}]
  %s4 = inlined_call_operand.hbm [shape: bf16[128,128], index: 4, kind: input, shape index: {}]
  %s5 = inlined_call_operand.vmem [shape: f32[4,128], index: 5, kind: input, shape index: {}]
  %s6 = inlined_call_operand.hbm [shape: bf16[16,128], index: 6, kind: output, shape index: {}]
  %s7 = sld [smem:[#allocation0]]
  $region54: #{tpu_custom_call.1} parent=0
    _
  %s9 = ssub.s32 1, %s7
  %s10 = scalar_select 0, %s9, %s7
  $region1: #{tpu_custom_call.1} parent=0
    #allocation2 [shape = 'u8[8192]{0}', space=vmem, size = 0x2000, scoped, tag = 'input window, operand 0, single buffered']
    #allocation3 [shape = 's32[1]{0}', space=sflag, size = 0x4, scoped, tag = 'scoped memory for tpu_custom_call.1']
    #allocation4 [shape = 's32[1]{0}', space=sflag, size = 0x4, scoped, tag = 'scoped memory for tpu_custom_call.1']
    #allocation5 [shape = 'u8[4096]{0}', space=vmem, size = 0x1000, scoped, tag = 'input window, operand 1, single buffered']
    #allocation6 [shape = 's32[1]{0}', space=sflag, size = 0x4, scoped, tag = 'scoped memory for tpu_custom_call.1']
    #allocation7 [shape = 'u8[32768]{0}', space=vmem, size = 0x8000, scoped, tag = 'input window, operand 2, single buffered']
    #allocation8 [shape = 'u8[32768]{0}', space=vmem, size = 0x8000, scoped, tag = 'input window, operand 3, single buffered']
    #allocation9 [shape = 's32[1]{0}', space=sflag, size = 0x4, scoped, tag = 'scoped memory for tpu_custom_call.1']
    #allocation10 [shape = 'u8[32768]{0}', space=vmem, size = 0x8000, scoped, tag = 'input window, operand 4, single buffered']
    #allocation11 [shape = 'u8[4096]{0}', space=vmem, size = 0x1000, scoped, tag = 'output window, operand 0, single buffered']
    %11 = vsyncpa [#allocation3], 0
    %12 = vsyncpa [#allocation6], 0
    %13 = vsyncpa [#allocation9], 0
    %14 = vsyncpa [#allocation4], 0
    // Predicated region
    $region2: #{tpu_custom_call.1} parent=1 // pred_check
      _
    $region3: #{tpu_custom_call.1} parent=1 // pred_check_branch
      %16 = sbr.rel (0) target = $region5
    $region4: #{tpu_custom_call.1} parent=1 // pred_region
      %18 = vsyncadd [#allocation3], 0
      %s19 = sshll.u32 %s0, 4
      %s20 = int_to_ptr.hbm [resolvable:$true] %s19
      %s21 = sshll.u32 [#allocation2], 4
      %s22 = int_to_ptr.vmem [resolvable:$true] %s21
      %27 = dma.hbm_to_vmem [thread:$0]  %s20, 256, %s22, [#allocation3], 128, 128, 8
    $region5: #{tpu_custom_call.1} parent=1 // pred_fallthru
      _
    // Predicated region
    $region6: #{tpu_custom_call.1} parent=1 // pred_check
      _
    $region7: #{tpu_custom_call.1} parent=1 // pred_check_branch
      %29 = sbr.rel (0) target = $region9
    $region8: #{tpu_custom_call.1} parent=1 // pred_region
      %31 = vsyncadd [#allocation6], 0
      %s32 = sshll.u32 %s1, 4
      %s33 = int_to_ptr.hbm [resolvable:$true] %s32
      %s34 = sshll.u32 [#allocation5], 4
      %s35 = int_to_ptr.vmem [resolvable:$true] %s34
      %40 = dma.hbm_to_vmem [thread:$0]  %s33, 128, %s35, [#allocation6], 64, 64, 4
    $region9: #{tpu_custom_call.1} parent=1 // pred_fallthru
      _
    // Predicated region
    $region10: #{tpu_custom_call.1} parent=1 // pred_check
      _
    $region11: #{tpu_custom_call.1} parent=1 // pred_check_branch
      %42 = sbr.rel (0) target = $region13
    $region12: #{tpu_custom_call.1} parent=1 // pred_region
      %44 = vsyncadd [#allocation6], 0
      %s45 = sshll.u32 %s2, 4
      %s46 = int_to_ptr.hbm [resolvable:$true] %s45
      %s47 = sshll.u32 [#allocation7], 4
      %s48 = int_to_ptr.vmem [resolvable:$true] %s47
      %53 = dma.hbm_to_vmem [thread:$0]  %s46, 1024, %s48, [#allocation6], 64, 64, 4
    $region13: #{tpu_custom_call.1} parent=1 // pred_fallthru
      _
    // Predicated region
    $region14: #{tpu_custom_call.1} parent=1 // pred_check
      _
    $region15: #{tpu_custom_call.1} parent=1 // pred_check_branch
      %55 = sbr.rel (0) target = $region17
    $region16: #{tpu_custom_call.1} parent=1 // pred_region
      %57 = vsyncadd [#allocation9], 0
      %s58 = sshll.u32 %s3, 4
      %s59 = int_to_ptr.hbm [resolvable:$true] %s58
      %s60 = sshll.u32 [#allocation8], 4
      %s61 = int_to_ptr.vmem [resolvable:$true] %s60
      %66 = dma.hbm_to_vmem [thread:$0]  %s59, 1024, %s61, [#allocation9], 64, 64, 4
    $region17: #{tpu_custom_call.1} parent=1 // pred_fallthru
      _
    // Predicated region
    $region18: #{tpu_custom_call.1} parent=1 // pred_check
      _
    $region19: #{tpu_custom_call.1} parent=1 // pred_check_branch
      %68 = sbr.rel (0) target = $region21
    $region20: #{tpu_custom_call.1} parent=1 // pred_region
      %70 = vsyncadd [#allocation9], 0
      %s71 = sshll.u32 %s4, 4
      %s72 = int_to_ptr.hbm [resolvable:$true] %s71
      %s73 = sshll.u32 [#allocation10], 4
      %s74 = int_to_ptr.vmem [resolvable:$true] %s73
      %79 = dma.hbm_to_vmem [thread:$0]  %s72, 1024, %s74, [#allocation9], 64, 64, 4
    $region21: #{tpu_custom_call.1} parent=1 // pred_fallthru
      _
    // Predicated region
    $region22: #{tpu_custom_call.1} parent=1 // pred_check
      _
    $region23: #{tpu_custom_call.1} parent=1 // pred_check_branch
      %81 = sbr.rel (0) target = $region25
    $region24: #{tpu_custom_call.1} parent=1 // pred_region
      _
    $region25: #{tpu_custom_call.1} parent=1 // pred_fallthru
      _
    // Predicated region
    $region26: #{tpu_custom_call.1} parent=1 // pred_check
      _
    $region27: #{tpu_custom_call.1} parent=1 // pred_check_branch
      %83 = sbr.rel (0) target = $region29
    $region28: #{tpu_custom_call.1} parent=1 // pred_region
      %85 = dma.done [#allocation3], 256
    $region29: #{tpu_custom_call.1} parent=1 // pred_fallthru
      _
    // Predicated region
    $region30: #{tpu_custom_call.1} parent=1 // pred_check
      _
    $region31: #{tpu_custom_call.1} parent=1 // pred_check_branch
      %87 = sbr.rel (0) target = $region33
    $region32: #{tpu_custom_call.1} parent=1 // pred_region
      %89 = dma.done [#allocation6], 128
    $region33: #{tpu_custom_call.1} parent=1 // pred_fallthru
      _
    // Predicated region
    $region34: #{tpu_custom_call.1} parent=1 // pred_check
      _
    $region35: #{tpu_custom_call.1} parent=1 // pred_check_branch
      %91 = sbr.rel (0) target = $region37
    $region36: #{tpu_custom_call.1} parent=1 // pred_region
      %93 = dma.done [#allocation6], 1024
    $region37: #{tpu_custom_call.1} parent=1 // pred_fallthru
      _
    // Predicated region
    $region38: #{tpu_custom_call.1} parent=1 // pred_check
      _
    $region39: #{tpu_custom_call.1} parent=1 // pred_check_branch
      %95 = sbr.rel (0) target = $region41
    $region40: #{tpu_custom_call.1} parent=1 // pred_region
      %97 = dma.done [#allocation9], 1024
    $region41: #{tpu_custom_call.1} parent=1 // pred_fallthru
      _
    // Predicated region
    $region42: #{tpu_custom_call.1} parent=1 // pred_check
      _
    $region43: #{tpu_custom_call.1} parent=1 // pred_check_branch
      %99 = sbr.rel (0) target = $region45
    $region44: #{tpu_custom_call.1} parent=1 // pred_region
      %101 = dma.done [#allocation9], 1024
    $region45: #{tpu_custom_call.1} parent=1 // pred_fallthru
      _
    %v103 = vld [vmem:[%s5] sm:$0xf]
    %v104 = vld [vmem:[#allocation2] sm:$0xff]
    %v105 = vld [vmem:[#allocation2 + $0x8] sm:$0xff]
    %v106 = vpack.c.bf16 %v105, %v104
    %v107 = vld [vmem:[#allocation5] sm:$0xf]
    %v108 = vld [vmem:[#allocation5 + $0x4] sm:$0xf]
    %v109 = vperm.slane %v103, 0
    %v112 = vunpack.c.l.b16 %v107
    %v113 = vunpack.c.l.b16 %v108
    %v114 = vpack.c.b16 %v113, %v112
    %vm116 = vcmask 130048
    %v118 = vsel %vm116, %v106, 0
    %120 = vmatpush.bf16.msra.mxu0 0
    %121 = vmatpush.bf16.msra.mxu0 0
    %122 = vmatpush.bf16.msra.mxu0 0
    %123 = vmatpush.bf16.msra.mxu0 0
    %124 = vmatpush.bf16.msra.mxu0 0
    %125 = vmatpush.bf16.msra.mxu0 0
    %126 = vmatpush.bf16.msra.mxu0 0
    %127 = vmatpush.bf16.msra.mxu0 %v114
    %128 = vmatmul.bf16.gmra.mxu0 %v118
    %v129 = vpop.f32.mrf.mxu0
    %v130 = vadd.f32 %v109, %v129
    %v131 = vpop.f32.mrf.mxu0
    %v132 = vadd.f32 %v109, %v131
    %133 = vdwg.mxu0
    %v134 = vmax.f32 %v130, 0.0
    %v135 = vmax.f32 %v132, 0.0
    %v136 = vpack.c.bf16 %v135, %v134
    %v137 = vld [vmem:[#allocation7] sm:$0xf]
    %v138 = vld [vmem:[#allocation7 + $0x4] sm:$0xf]
    %v139 = vld [vmem:[#allocation7 + $0x8] sm:$0xf]
    %v140 = vld [vmem:[#allocation7 + $0xc] sm:$0xf]
    %v141 = vld [vmem:[#allocation7 + $0x10] sm:$0xf]
    %v142 = vld [vmem:[#allocation7 + $0x14] sm:$0xf]
    %v143 = vld [vmem:[#allocation7 + $0x18] sm:$0xf]
    %v144 = vld [vmem:[#allocation7 + $0x1c] sm:$0xf]
    %v145 = vld [vmem:[#allocation7 + $0x20] sm:$0xf]
    %v146 = vld [vmem:[#allocation7 + $0x24] sm:$0xf]
    %v147 = vld [vmem:[#allocation7 + $0x28] sm:$0xf]
    %v148 = vld [vmem:[#allocation7 + $0x2c] sm:$0xf]
    %v149 = vld [vmem:[#allocation7 + $0x30] sm:$0xf]
    %v150 = vld [vmem:[#allocation7 + $0x34] sm:$0xf]
    %v151 = vld [vmem:[#allocation7 + $0x38] sm:$0xf]
    %v152 = vld [vmem:[#allocation7 + $0x3c] sm:$0xf]
    %v153 = vperm.slane %v103, 1
    %v170 = vunpack.c.l.b16 %v137
    %v171 = vunpack.c.l.b16 %v138
    %v172 = vunpack.c.l.b16 %v139
    %v173 = vunpack.c.l.b16 %v140
    %v174 = vunpack.c.l.b16 %v141
    %v175 = vunpack.c.l.b16 %v142
    %v176 = vunpack.c.l.b16 %v143
    %v177 = vunpack.c.l.b16 %v144
    %v178 = vunpack.c.l.b16 %v145
    %v179 = vunpack.c.l.b16 %v146
    %v180 = vunpack.c.l.b16 %v147
    %v181 = vunpack.c.l.b16 %v148
    %v182 = vunpack.c.l.b16 %v149
    %v183 = vunpack.c.l.b16 %v150
    %v184 = vunpack.c.l.b16 %v151
    %v185 = vunpack.c.l.b16 %v152
    %v186 = vpack.c.b16 %v171, %v170
    %v187 = vpack.c.b16 %v173, %v172
    %v188 = vpack.c.b16 %v175, %v174
    %v189 = vpack.c.b16 %v177, %v176
    %v190 = vpack.c.b16 %v179, %v178
    %v191 = vpack.c.b16 %v181, %v180
    %v192 = vpack.c.b16 %v183, %v182
    %v193 = vpack.c.b16 %v185, %v184
    %202 = vmatpush.bf16.msra.mxu0 %v193
    %203 = vmatpush.bf16.msra.mxu0 %v192
    %204 = vmatpush.bf16.msra.mxu0 %v191
    %205 = vmatpush.bf16.msra.mxu0 %v190
    %206 = vmatpush.bf16.msra.mxu0 %v189
    %207 = vmatpush.bf16.msra.mxu0 %v188
    %208 = vmatpush.bf16.msra.mxu0 %v187
    %209 = vmatpush.bf16.msra.mxu0 %v186
    %210 = vmatmul.bf16.gmra.mxu0 %v136
    %v211 = vpop.f32.mrf.mxu0
    %v212 = vadd.f32 %v153, %v211
    %v213 = vpop.f32.mrf.mxu0
    %v214 = vadd.f32 %v153, %v213
    %215 = vdwg.mxu0
    %v216 = vmax.f32 %v212, 0.0
    %v217 = vmax.f32 %v214, 0.0
    %v218 = vpack.c.bf16 %v217, %v216
    %v219 = vld [vmem:[#allocation8] sm:$0xf]
    %v220 = vld [vmem:[#allocation8 + $0x4] sm:$0xf]
    %v221 = vld [vmem:[#allocation8 + $0x8] sm:$0xf]
    %v222 = vld [vmem:[#allocation8 + $0xc] sm:$0xf]
    %v223 = vld [vmem:[#allocation8 + $0x10] sm:$0xf]
    %v224 = vld [vmem:[#allocation8 + $0x14] sm:$0xf]
    %v225 = vld [vmem:[#allocation8 + $0x18] sm:$0xf]
    %v226 = vld [vmem:[#allocation8 + $0x1c] sm:$0xf]
    %v227 = vld [vmem:[#allocation8 + $0x20] sm:$0xf]
    %v228 = vld [vmem:[#allocation8 + $0x24] sm:$0xf]
    %v229 = vld [vmem:[#allocation8 + $0x28] sm:$0xf]
    %v230 = vld [vmem:[#allocation8 + $0x2c] sm:$0xf]
    %v231 = vld [vmem:[#allocation8 + $0x30] sm:$0xf]
    %v232 = vld [vmem:[#allocation8 + $0x34] sm:$0xf]
    %v233 = vld [vmem:[#allocation8 + $0x38] sm:$0xf]
    %v234 = vld [vmem:[#allocation8 + $0x3c] sm:$0xf]
    %v235 = vperm.slane %v103, 2
    %v252 = vunpack.c.l.b16 %v219
    %v253 = vunpack.c.l.b16 %v220
    %v254 = vunpack.c.l.b16 %v221
    %v255 = vunpack.c.l.b16 %v222
    %v256 = vunpack.c.l.b16 %v223
    %v257 = vunpack.c.l.b16 %v224
    %v258 = vunpack.c.l.b16 %v225
    %v259 = vunpack.c.l.b16 %v226
    %v260 = vunpack.c.l.b16 %v227
    %v261 = vunpack.c.l.b16 %v228
    %v262 = vunpack.c.l.b16 %v229
    %v263 = vunpack.c.l.b16 %v230
    %v264 = vunpack.c.l.b16 %v231
    %v265 = vunpack.c.l.b16 %v232
    %v266 = vunpack.c.l.b16 %v233
    %v267 = vunpack.c.l.b16 %v234
    %v268 = vpack.c.b16 %v253, %v252
    %v269 = vpack.c.b16 %v255, %v254
    %v270 = vpack.c.b16 %v257, %v256
    %v271 = vpack.c.b16 %v259, %v258
    %v272 = vpack.c.b16 %v261, %v260
    %v273 = vpack.c.b16 %v263, %v262
    %v274 = vpack.c.b16 %v265, %v264
    %v275 = vpack.c.b16 %v267, %v266
    %284 = vmatpush.bf16.msra.mxu0 %v275
    %285 = vmatpush.bf16.msra.mxu0 %v274
    %286 = vmatpush.bf16.msra.mxu0 %v273
    %287 = vmatpush.bf16.msra.mxu0 %v272
    %288 = vmatpush.bf16.msra.mxu0 %v271
    %289 = vmatpush.bf16.msra.mxu0 %v270
    %290 = vmatpush.bf16.msra.mxu0 %v269
    %291 = vmatpush.bf16.msra.mxu0 %v268
    %292 = vmatmul.bf16.gmra.mxu0 %v218
    %v293 = vpop.f32.mrf.mxu0
    %v294 = vadd.f32 %v235, %v293
    %v295 = vpop.f32.mrf.mxu0
    %v296 = vadd.f32 %v235, %v295
    %297 = vdwg.mxu0
    %v298 = vmax.f32 %v294, 0.0
    %v299 = vmax.f32 %v296, 0.0
    %v300 = vpack.c.bf16 %v299, %v298
    %v301 = vld [vmem:[#allocation10] sm:$0xf]
    %v302 = vld [vmem:[#allocation10 + $0x4] sm:$0xf]
    %v303 = vld [vmem:[#allocation10 + $0x8] sm:$0xf]
    %v304 = vld [vmem:[#allocation10 + $0xc] sm:$0xf]
    %v305 = vld [vmem:[#allocation10 + $0x10] sm:$0xf]
    %v306 = vld [vmem:[#allocation10 + $0x14] sm:$0xf]
    %v307 = vld [vmem:[#allocation10 + $0x18] sm:$0xf]
    %v308 = vld [vmem:[#allocation10 + $0x1c] sm:$0xf]
    %v309 = vld [vmem:[#allocation10 + $0x20] sm:$0xf]
    %v310 = vld [vmem:[#allocation10 + $0x24] sm:$0xf]
    %v311 = vld [vmem:[#allocation10 + $0x28] sm:$0xf]
    %v312 = vld [vmem:[#allocation10 + $0x2c] sm:$0xf]
    %v313 = vld [vmem:[#allocation10 + $0x30] sm:$0xf]
    %v314 = vld [vmem:[#allocation10 + $0x34] sm:$0xf]
    %v315 = vld [vmem:[#allocation10 + $0x38] sm:$0xf]
    %v316 = vld [vmem:[#allocation10 + $0x3c] sm:$0xf]
    %v317 = vperm.slane %v103, 3
    %v334 = vunpack.c.l.b16 %v301
    %v335 = vunpack.c.l.b16 %v302
    %v336 = vunpack.c.l.b16 %v303
    %v337 = vunpack.c.l.b16 %v304
    %v338 = vunpack.c.l.b16 %v305
    %v339 = vunpack.c.l.b16 %v306
    %v340 = vunpack.c.l.b16 %v307
    %v341 = vunpack.c.l.b16 %v308
    %v342 = vunpack.c.l.b16 %v309
    %v343 = vunpack.c.l.b16 %v310
    %v344 = vunpack.c.l.b16 %v311
    %v345 = vunpack.c.l.b16 %v312
    %v346 = vunpack.c.l.b16 %v313
    %v347 = vunpack.c.l.b16 %v314
    %v348 = vunpack.c.l.b16 %v315
    %v349 = vunpack.c.l.b16 %v316
    %v350 = vpack.c.b16 %v335, %v334
    %v351 = vpack.c.b16 %v337, %v336
    %v352 = vpack.c.b16 %v339, %v338
    %v353 = vpack.c.b16 %v341, %v340
    %v354 = vpack.c.b16 %v343, %v342
    %v355 = vpack.c.b16 %v345, %v344
    %v356 = vpack.c.b16 %v347, %v346
    %v357 = vpack.c.b16 %v349, %v348
    %366 = vmatpush.bf16.msra.mxu0 %v357
    %367 = vmatpush.bf16.msra.mxu0 %v356
    %368 = vmatpush.bf16.msra.mxu0 %v355
    %369 = vmatpush.bf16.msra.mxu0 %v354
    %370 = vmatpush.bf16.msra.mxu0 %v353
    %371 = vmatpush.bf16.msra.mxu0 %v352
    %372 = vmatpush.bf16.msra.mxu0 %v351
    %373 = vmatpush.bf16.msra.mxu0 %v350
    %374 = vmatmul.bf16.gmra.mxu0 %v300
    %v375 = vpop.f32.mrf.mxu0
    %v376 = vadd.f32 %v317, %v375
    %v377 = vpop.f32.mrf.mxu0
    %v378 = vadd.f32 %v317, %v377
    %379 = vdwg.mxu0
    %v380 = vpack.c.bf16 %v376, %v376
    %v381 = vpack.c.bf16 %v378, %v378
    %382 = vst [vmem:[#allocation11] sm:$0xf] %v380
    %383 = vst [vmem:[#allocation11 + $0x4] sm:$0xf] %v381
    // Predicated region
    $region46: #{tpu_custom_call.1} parent=1 // pred_check
      _
    $region47: #{tpu_custom_call.1} parent=1 // pred_check_branch
      %385 = sbr.rel (0) target = $region49
    $region48: #{tpu_custom_call.1} parent=1 // pred_region
      %387 = vsyncadd [#allocation4], 0
      %s388 = sshll.u32 [#allocation11], 4
      %s389 = int_to_ptr.vmem [resolvable:$true] %s388
      %s390 = sshll.u32 %s6, 4
      %s391 = int_to_ptr.hbm [resolvable:$true] %s390
      %396 = dma.vmem_to_hbm [thread:$0]  %s389, 128, %s391, [#allocation4], 64, 64, 4
    $region49: #{tpu_custom_call.1} parent=1 // pred_fallthru
      _
    // Predicated region
    $region50: #{tpu_custom_call.1} parent=1 // pred_check
      _
    $region51: #{tpu_custom_call.1} parent=1 // pred_check_branch
      %398 = sbr.rel (0) target = $region53
    $region52: #{tpu_custom_call.1} parent=1 // pred_region
      %400 = dma.done [#allocation4], 128
    $region53: #{tpu_custom_call.1} parent=1 // pred_fallthru
      _
    %401 = vsyncpa [#allocation3], 1
    %402 = vsyncpa [#allocation6], 1
    %403 = vsyncpa [#allocation9], 1
    %404 = vsyncpa [#allocation4], 1

// kernel: tpu_custom_call.1
$region0: #{tpu_custom_call.1}
  #allocation0 [shape = 'u32[]', space=smem, size = 0x4, offset = 0x4, fixed_abs, tag = 'smem constant byte address 0x4 - core index']
  #allocation1 [shape = 'u32[72,128]{1,0:T(1,128)}', space=vmem, size = 0x9000, scoped, tag = 'internal scratch']
  %s0 = inlined_call_operand.hbm [shape: f32[16,16], index: 0, kind: input, shape index: {}]
  %s1 = inlined_call_operand.hbm [shape: bf16[16,128], index: 1, kind: input, shape index: {}]
  %s2 = inlined_call_operand.hbm [shape: bf16[128,128], index: 2, kind: input, shape index: {}]
  %s3 = inlined_call_operand.hbm [shape: bf16[128,128], index: 3, kind: input, shape index: {}]
  %s4 = inlined_call_operand.hbm [shape: bf16[128,128], index: 4, kind: input, shape index: {}]
  %s5 = inlined_call_operand.vmem [shape: f32[4,128], index: 5, kind: input, shape index: {}]
  %s6 = inlined_call_operand.hbm [shape: bf16[16,128], index: 6, kind: output, shape index: {}]
  %s7 = sld [smem:[#allocation0]]
  $region54: #{tpu_custom_call.1} parent=0
    _
  %s9 = ssub.s32 1, %s7
  %s10 = scalar_select 0, %s9, %s7
  $region1: #{tpu_custom_call.1} parent=0
    #allocation2 [shape = 'u8[8192]{0}', space=vmem, size = 0x2000, scoped, tag = 'input window, operand 0, single buffered']
    #allocation3 [shape = 's32[1]{0}', space=sflag, size = 0x4, scoped, tag = 'scoped memory for tpu_custom_call.1']
    #allocation4 [shape = 's32[1]{0}', space=sflag, size = 0x4, scoped, tag = 'scoped memory for tpu_custom_call.1']
    #allocation5 [shape = 'u8[4096]{0}', space=vmem, size = 0x1000, scoped, tag = 'input window, operand 1, single buffered']
    #allocation6 [shape = 's32[1]{0}', space=sflag, size = 0x4, scoped, tag = 'scoped memory for tpu_custom_call.1']
    #allocation7 [shape = 'u8[32768]{0}', space=vmem, size = 0x8000, scoped, tag = 'input window, operand 2, single buffered']
    #allocation8 [shape = 'u8[32768]{0}', space=vmem, size = 0x8000, scoped, tag = 'input window, operand 3, single buffered']
    #allocation9 [shape = 's32[1]{0}', space=sflag, size = 0x4, scoped, tag = 'scoped memory for tpu_custom_call.1']
    #allocation10 [shape = 'u8[32768]{0}', space=vmem, size = 0x8000, scoped, tag = 'input window, operand 4, single buffered']
    #allocation11 [shape = 'u8[4096]{0}', space=vmem, size = 0x1000, scoped, tag = 'output window, operand 0, single buffered']
    %11 = vsyncpa [#allocation3], 0
    %12 = vsyncpa [#allocation6], 0
    %13 = vsyncpa [#allocation9], 0
    %14 = vsyncpa [#allocation4], 0
    // Predicated region
    $region2: #{tpu_custom_call.1} parent=1 // pred_check
      _
    $region3: #{tpu_custom_call.1} parent=1 // pred_check_branch
      %16 = sbr.rel (0) target = $region5
    $region4: #{tpu_custom_call.1} parent=1 // pred_region
      %18 = vsyncadd [#allocation3], 0
      %s19 = sshll.u32 %s0, 4
      %s20 = int_to_ptr.hbm [resolvable:$true] %s19
      %s21 = sshll.u32 [#allocation2], 4
      %s22 = int_to_ptr.vmem [resolvable:$true] %s21
      %27 = dma.hbm_to_vmem [thread:$0]  %s20, 256, %s22, [#allocation3], 128, 128, 8
    $region5: #{tpu_custom_call.1} parent=1 // pred_fallthru
      _
    // Predicated region
    $region6: #{tpu_custom_call.1} parent=1 // pred_check
      _
    $region7: #{tpu_custom_call.1} parent=1 // pred_check_branch
      %29 = sbr.rel (0) target = $region9
    $region8: #{tpu_custom_call.1} parent=1 // pred_region
      %31 = vsyncadd [#allocation6], 0
      %s32 = sshll.u32 %s1, 4
      %s33 = int_to_ptr.hbm [resolvable:$true] %s32
      %s34 = sshll.u32 [#allocation5], 4
      %s35 = int_to_ptr.vmem [resolvable:$true] %s34
      %40 = dma.hbm_to_vmem [thread:$0]  %s33, 128, %s35, [#allocation6], 64, 64, 4
    $region9: #{tpu_custom_call.1} parent=1 // pred_fallthru
      _
    // Predicated region
    $region10: #{tpu_custom_call.1} parent=1 // pred_check
      _
    $region11: #{tpu_custom_call.1} parent=1 // pred_check_branch
      %42 = sbr.rel (0) target = $region13
    $region12: #{tpu_custom_call.1} parent=1 // pred_region
      %44 = vsyncadd [#allocation6], 0
      %s45 = sshll.u32 %s2, 4
      %s46 = int_to_ptr.hbm [resolvable:$true] %s45
      %s47 = sshll.u32 [#allocation7], 4
      %s48 = int_to_ptr.vmem [resolvable:$true] %s47
      %53 = dma.hbm_to_vmem [thread:$0]  %s46, 1024, %s48, [#allocation6], 64, 64, 4
    $region13: #{tpu_custom_call.1} parent=1 // pred_fallthru
      _
    // Predicated region
    $region14: #{tpu_custom_call.1} parent=1 // pred_check
      _
    $region15: #{tpu_custom_call.1} parent=1 // pred_check_branch
      %55 = sbr.rel (0) target = $region17
    $region16: #{tpu_custom_call.1} parent=1 // pred_region
      %57 = vsyncadd [#allocation9], 0
      %s58 = sshll.u32 %s3, 4
      %s59 = int_to_ptr.hbm [resolvable:$true] %s58
      %s60 = sshll.u32 [#allocation8], 4
      %s61 = int_to_ptr.vmem [resolvable:$true] %s60
      %66 = dma.hbm_to_vmem [thread:$0]  %s59, 1024, %s61, [#allocation9], 64, 64, 4
    $region17: #{tpu_custom_call.1} parent=1 // pred_fallthru
      _
    // Predicated region
    $region18: #{tpu_custom_call.1} parent=1 // pred_check
      _
    $region19: #{tpu_custom_call.1} parent=1 // pred_check_branch
      %68 = sbr.rel (0) target = $region21
    $region20: #{tpu_custom_call.1} parent=1 // pred_region
      %70 = vsyncadd [#allocation9], 0
      %s71 = sshll.u32 %s4, 4
      %s72 = int_to_ptr.hbm [resolvable:$true] %s71
      %s73 = sshll.u32 [#allocation10], 4
      %s74 = int_to_ptr.vmem [resolvable:$true] %s73
      %79 = dma.hbm_to_vmem [thread:$0]  %s72, 1024, %s74, [#allocation9], 64, 64, 4
    $region21: #{tpu_custom_call.1} parent=1 // pred_fallthru
      _
    // Predicated region
    $region22: #{tpu_custom_call.1} parent=1 // pred_check
      _
    $region23: #{tpu_custom_call.1} parent=1 // pred_check_branch
      %81 = sbr.rel (0) target = $region25
    $region24: #{tpu_custom_call.1} parent=1 // pred_region
      _
    $region25: #{tpu_custom_call.1} parent=1 // pred_fallthru
      _
    // Predicated region
    $region26: #{tpu_custom_call.1} parent=1 // pred_check
      _
    $region27: #{tpu_custom_call.1} parent=1 // pred_check_branch
      %83 = sbr.rel (0) target = $region29
    $region28: #{tpu_custom_call.1} parent=1 // pred_region
      %85 = dma.done [#allocation3], 256
    $region29: #{tpu_custom_call.1} parent=1 // pred_fallthru
      _
    // Predicated region
    $region30: #{tpu_custom_call.1} parent=1 // pred_check
      _
    $region31: #{tpu_custom_call.1} parent=1 // pred_check_branch
      %87 = sbr.rel (0) target = $region33
    $region32: #{tpu_custom_call.1} parent=1 // pred_region
      %89 = dma.done [#allocation6], 128
    $region33: #{tpu_custom_call.1} parent=1 // pred_fallthru
      _
    // Predicated region
    $region34: #{tpu_custom_call.1} parent=1 // pred_check
      _
    $region35: #{tpu_custom_call.1} parent=1 // pred_check_branch
      %91 = sbr.rel (0) target = $region37
    $region36: #{tpu_custom_call.1} parent=1 // pred_region
      %93 = dma.done [#allocation6], 1024
    $region37: #{tpu_custom_call.1} parent=1 // pred_fallthru
      _
    // Predicated region
    $region38: #{tpu_custom_call.1} parent=1 // pred_check
      _
    $region39: #{tpu_custom_call.1} parent=1 // pred_check_branch
      %95 = sbr.rel (0) target = $region41
    $region40: #{tpu_custom_call.1} parent=1 // pred_region
      %97 = dma.done [#allocation9], 1024
    $region41: #{tpu_custom_call.1} parent=1 // pred_fallthru
      _
    // Predicated region
    $region42: #{tpu_custom_call.1} parent=1 // pred_check
      _
    $region43: #{tpu_custom_call.1} parent=1 // pred_check_branch
      %99 = sbr.rel (0) target = $region45
    $region44: #{tpu_custom_call.1} parent=1 // pred_region
      %101 = dma.done [#allocation9], 1024
    $region45: #{tpu_custom_call.1} parent=1 // pred_fallthru
      _
    %v103 = vld [vmem:[%s5] sm:$0xf]
    %v104 = vld [vmem:[#allocation2] sm:$0xff]
    %v105 = vld [vmem:[#allocation2 + $0x8] sm:$0xff]
    %v106 = vpack.c.bf16 %v105, %v104
    %v107 = vld [vmem:[#allocation5] sm:$0xf]
    %v108 = vld [vmem:[#allocation5 + $0x4] sm:$0xf]
    %v109 = vperm.slane %v103, 0
    %v112 = vunpack.c.l.b16 %v107
    %v113 = vunpack.c.l.b16 %v108
    %v114 = vpack.c.b16 %v113, %v112
    %vm116 = vcmask 130048
    %v118 = vsel %vm116, %v106, 0
    %120 = vmatpush.bf16.msra.mxu0 0
    %121 = vmatpush.bf16.msra.mxu0 0
    %122 = vmatpush.bf16.msra.mxu0 0
    %123 = vmatpush.bf16.msra.mxu0 0
    %124 = vmatpush.bf16.msra.mxu0 0
    %125 = vmatpush.bf16.msra.mxu0 0
    %126 = vmatpush.bf16.msra.mxu0 0
    %127 = vmatpush.bf16.msra.mxu0 %v114
    %128 = vmatmul.bf16.gmra.mxu0 %v118
    %v129 = vpop.f32.mrf.mxu0
    %v130 = vadd.f32 %v109, %v129
    %v131 = vpop.f32.mrf.mxu0
    %v132 = vadd.f32 %v109, %v131
    %133 = vdwg.mxu0
    %v134 = vmax.f32 %v130, 0.0
    %v135 = vmax.f32 %v132, 0.0
    %v136 = vpack.c.bf16 %v135, %v134
    %v137 = vld [vmem:[#allocation7] sm:$0xf]
    %v138 = vld [vmem:[#allocation7 + $0x4] sm:$0xf]
    %v139 = vld [vmem:[#allocation7 + $0x8] sm:$0xf]
    %v140 = vld [vmem:[#allocation7 + $0xc] sm:$0xf]
    %v141 = vld [vmem:[#allocation7 + $0x10] sm:$0xf]
    %v142 = vld [vmem:[#allocation7 + $0x14] sm:$0xf]
    %v143 = vld [vmem:[#allocation7 + $0x18] sm:$0xf]
    %v144 = vld [vmem:[#allocation7 + $0x1c] sm:$0xf]
    %v145 = vld [vmem:[#allocation7 + $0x20] sm:$0xf]
    %v146 = vld [vmem:[#allocation7 + $0x24] sm:$0xf]
    %v147 = vld [vmem:[#allocation7 + $0x28] sm:$0xf]
    %v148 = vld [vmem:[#allocation7 + $0x2c] sm:$0xf]
    %v149 = vld [vmem:[#allocation7 + $0x30] sm:$0xf]
    %v150 = vld [vmem:[#allocation7 + $0x34] sm:$0xf]
    %v151 = vld [vmem:[#allocation7 + $0x38] sm:$0xf]
    %v152 = vld [vmem:[#allocation7 + $0x3c] sm:$0xf]
    %v153 = vperm.slane %v103, 1
    %v170 = vunpack.c.l.b16 %v137
    %v171 = vunpack.c.l.b16 %v138
    %v172 = vunpack.c.l.b16 %v139
    %v173 = vunpack.c.l.b16 %v140
    %v174 = vunpack.c.l.b16 %v141
    %v175 = vunpack.c.l.b16 %v142
    %v176 = vunpack.c.l.b16 %v143
    %v177 = vunpack.c.l.b16 %v144
    %v178 = vunpack.c.l.b16 %v145
    %v179 = vunpack.c.l.b16 %v146
    %v180 = vunpack.c.l.b16 %v147
    %v181 = vunpack.c.l.b16 %v148
    %v182 = vunpack.c.l.b16 %v149
    %v183 = vunpack.c.l.b16 %v150
    %v184 = vunpack.c.l.b16 %v151
    %v185 = vunpack.c.l.b16 %v152
    %v186 = vpack.c.b16 %v171, %v170
    %v187 = vpack.c.b16 %v173, %v172
    %v188 = vpack.c.b16 %v175, %v174
    %v189 = vpack.c.b16 %v177, %v176
    %v190 = vpack.c.b16 %v179, %v178
    %v191 = vpack.c.b16 %v181, %v180
    %v192 = vpack.c.b16 %v183, %v182
    %v193 = vpack.c.b16 %v185, %v184
    %202 = vmatpush.bf16.msra.mxu0 %v193
    %203 = vmatpush.bf16.msra.mxu0 %v192
    %204 = vmatpush.bf16.msra.mxu0 %v191
    %205 = vmatpush.bf16.msra.mxu0 %v190
    %206 = vmatpush.bf16.msra.mxu0 %v189
    %207 = vmatpush.bf16.msra.mxu0 %v188
    %208 = vmatpush.bf16.msra.mxu0 %v187
    %209 = vmatpush.bf16.msra.mxu0 %v186
    %210 = vmatmul.bf16.gmra.mxu0 %v136
    %v211 = vpop.f32.mrf.mxu0
    %v212 = vadd.f32 %v153, %v211
    %v213 = vpop.f32.mrf.mxu0
    %v214 = vadd.f32 %v153, %v213
    %215 = vdwg.mxu0
    %v216 = vmax.f32 %v212, 0.0
    %v217 = vmax.f32 %v214, 0.0
    %v218 = vpack.c.bf16 %v217, %v216
    %v219 = vld [vmem:[#allocation8] sm:$0xf]
    %v220 = vld [vmem:[#allocation8 + $0x4] sm:$0xf]
    %v221 = vld [vmem:[#allocation8 + $0x8] sm:$0xf]
    %v222 = vld [vmem:[#allocation8 + $0xc] sm:$0xf]
    %v223 = vld [vmem:[#allocation8 + $0x10] sm:$0xf]
    %v224 = vld [vmem:[#allocation8 + $0x14] sm:$0xf]
    %v225 = vld [vmem:[#allocation8 + $0x18] sm:$0xf]
    %v226 = vld [vmem:[#allocation8 + $0x1c] sm:$0xf]
    %v227 = vld [vmem:[#allocation8 + $0x20] sm:$0xf]
    %v228 = vld [vmem:[#allocation8 + $0x24] sm:$0xf]
    %v229 = vld [vmem:[#allocation8 + $0x28] sm:$0xf]
    %v230 = vld [vmem:[#allocation8 + $0x2c] sm:$0xf]
    %v231 = vld [vmem:[#allocation8 + $0x30] sm:$0xf]
    %v232 = vld [vmem:[#allocation8 + $0x34] sm:$0xf]
    %v233 = vld [vmem:[#allocation8 + $0x38] sm:$0xf]
    %v234 = vld [vmem:[#allocation8 + $0x3c] sm:$0xf]
    %v235 = vperm.slane %v103, 2
    %v252 = vunpack.c.l.b16 %v219
    %v253 = vunpack.c.l.b16 %v220
    %v254 = vunpack.c.l.b16 %v221
    %v255 = vunpack.c.l.b16 %v222
    %v256 = vunpack.c.l.b16 %v223
    %v257 = vunpack.c.l.b16 %v224
    %v258 = vunpack.c.l.b16 %v225
    %v259 = vunpack.c.l.b16 %v226
    %v260 = vunpack.c.l.b16 %v227
    %v261 = vunpack.c.l.b16 %v228
    %v262 = vunpack.c.l.b16 %v229
    %v263 = vunpack.c.l.b16 %v230
    %v264 = vunpack.c.l.b16 %v231
    %v265 = vunpack.c.l.b16 %v232
    %v266 = vunpack.c.l.b16 %v233
    %v267 = vunpack.c.l.b16 %v234
    %v268 = vpack.c.b16 %v253, %v252
    %v269 = vpack.c.b16 %v255, %v254
    %v270 = vpack.c.b16 %v257, %v256
    %v271 = vpack.c.b16 %v259, %v258
    %v272 = vpack.c.b16 %v261, %v260
    %v273 = vpack.c.b16 %v263, %v262
    %v274 = vpack.c.b16 %v265, %v264
    %v275 = vpack.c.b16 %v267, %v266
    %284 = vmatpush.bf16.msra.mxu0 %v275
    %285 = vmatpush.bf16.msra.mxu0 %v274
    %286 = vmatpush.bf16.msra.mxu0 %v273
    %287 = vmatpush.bf16.msra.mxu0 %v272
    %288 = vmatpush.bf16.msra.mxu0 %v271
    %289 = vmatpush.bf16.msra.mxu0 %v270
    %290 = vmatpush.bf16.msra.mxu0 %v269
    %291 = vmatpush.bf16.msra.mxu0 %v268
    %292 = vmatmul.bf16.gmra.mxu0 %v218
    %v293 = vpop.f32.mrf.mxu0
    %v294 = vadd.f32 %v235, %v293
    %v295 = vpop.f32.mrf.mxu0
    %v296 = vadd.f32 %v235, %v295
    %297 = vdwg.mxu0
    %v298 = vmax.f32 %v294, 0.0
    %v299 = vmax.f32 %v296, 0.0
    %v300 = vpack.c.bf16 %v299, %v298
    %v301 = vld [vmem:[#allocation10] sm:$0xf]
    %v302 = vld [vmem:[#allocation10 + $0x4] sm:$0xf]
    %v303 = vld [vmem:[#allocation10 + $0x8] sm:$0xf]
    %v304 = vld [vmem:[#allocation10 + $0xc] sm:$0xf]
    %v305 = vld [vmem:[#allocation10 + $0x10] sm:$0xf]
    %v306 = vld [vmem:[#allocation10 + $0x14] sm:$0xf]
    %v307 = vld [vmem:[#allocation10 + $0x18] sm:$0xf]
    %v308 = vld [vmem:[#allocation10 + $0x1c] sm:$0xf]
    %v309 = vld [vmem:[#allocation10 + $0x20] sm:$0xf]
    %v310 = vld [vmem:[#allocation10 + $0x24] sm:$0xf]
    %v311 = vld [vmem:[#allocation10 + $0x28] sm:$0xf]
    %v312 = vld [vmem:[#allocation10 + $0x2c] sm:$0xf]
    %v313 = vld [vmem:[#allocation10 + $0x30] sm:$0xf]
    %v314 = vld [vmem:[#allocation10 + $0x34] sm:$0xf]
    %v315 = vld [vmem:[#allocation10 + $0x38] sm:$0xf]
    %v316 = vld [vmem:[#allocation10 + $0x3c] sm:$0xf]
    %v317 = vperm.slane %v103, 3
    %v334 = vunpack.c.l.b16 %v301
    %v335 = vunpack.c.l.b16 %v302
    %v336 = vunpack.c.l.b16 %v303
    %v337 = vunpack.c.l.b16 %v304
    %v338 = vunpack.c.l.b16 %v305
    %v339 = vunpack.c.l.b16 %v306
    %v340 = vunpack.c.l.b16 %v307
    %v341 = vunpack.c.l.b16 %v308
    %v342 = vunpack.c.l.b16 %v309
    %v343 = vunpack.c.l.b16 %v310
    %v344 = vunpack.c.l.b16 %v311
    %v345 = vunpack.c.l.b16 %v312
    %v346 = vunpack.c.l.b16 %v313
    %v347 = vunpack.c.l.b16 %v314
    %v348 = vunpack.c.l.b16 %v315
    %v349 = vunpack.c.l.b16 %v316
    %v350 = vpack.c.b16 %v335, %v334
    %v351 = vpack.c.b16 %v337, %v336
    %v352 = vpack.c.b16 %v339, %v338
    %v353 = vpack.c.b16 %v341, %v340
    %v354 = vpack.c.b16 %v343, %v342
    %v355 = vpack.c.b16 %v345, %v344
    %v356 = vpack.c.b16 %v347, %v346
    %v357 = vpack.c.b16 %v349, %v348
    %366 = vmatpush.bf16.msra.mxu0 %v357
    %367 = vmatpush.bf16.msra.mxu0 %v356
    %368 = vmatpush.bf16.msra.mxu0 %v355
    %369 = vmatpush.bf16.msra.mxu0 %v354
    %370 = vmatpush.bf16.msra.mxu0 %v353
    %371 = vmatpush.bf16.msra.mxu0 %v352
    %372 = vmatpush.bf16.msra.mxu0 %v351
    %373 = vmatpush.bf16.msra.mxu0 %v350
    %374 = vmatmul.bf16.gmra.mxu0 %v300
    %v375 = vpop.f32.mrf.mxu0
    %v376 = vadd.f32 %v317, %v375
    %v377 = vpop.f32.mrf.mxu0
    %v378 = vadd.f32 %v317, %v377
    %379 = vdwg.mxu0
    %v380 = vpack.c.bf16 %v376, %v376
    %v381 = vpack.c.bf16 %v378, %v378
    %382 = vst [vmem:[#allocation11] sm:$0xf] %v380
    %383 = vst [vmem:[#allocation11 + $0x4] sm:$0xf] %v381
    // Predicated region
    $region46: #{tpu_custom_call.1} parent=1 // pred_check
      _
    $region47: #{tpu_custom_call.1} parent=1 // pred_check_branch
      %385 = sbr.rel (0) target = $region49
    $region48: #{tpu_custom_call.1} parent=1 // pred_region
      %387 = vsyncadd [#allocation4], 0
      %s388 = sshll.u32 [#allocation11], 4
      %s389 = int_to_ptr.vmem [resolvable:$true] %s388
      %s390 = sshll.u32 %s6, 4
      %s391 = int_to_ptr.hbm [resolvable:$true] %s390
      %396 = dma.vmem_to_hbm [thread:$0]  %s389, 128, %s391, [#allocation4], 64, 64, 4
    $region49: #{tpu_custom_call.1} parent=1 // pred_fallthru
      _
    // Predicated region
    $region50: #{tpu_custom_call.1} parent=1 // pred_check
      _
    $region51: #{tpu_custom_call.1} parent=1 // pred_check_branch
      %398 = sbr.rel (0) target = $region53
    $region52: #{tpu_custom_call.1} parent=1 // pred_region
      %400 = dma.done [#allocation4], 128
    $region53: #{tpu_custom_call.1} parent=1 // pred_fallthru
      _
    %401 = vsyncpa [#allocation3], 1
    %402 = vsyncpa [#allocation6], 1
    %403 = vsyncpa [#allocation9], 1
    %404 = vsyncpa [#allocation4], 1

</llo_original>
